<compile_context>
chip_gen: v7x
topology: tpu7x:2x2x1
jax: 0.10.0
libtpu: 0.0.40
codegen_flags: <defaults>
</compile_context>

<pallas_src>
import jax
import jax.numpy as jnp
from jax.experimental import pallas as pl
from jax.experimental.pallas import tpu as pltpu

LANE = 128      # vreg lane width: hidden dim padded to a multiple of this
SUBLANE = 16    # bf16 packs [16, 128] per vreg -> batch tiles multiple of 16


def _round_up(x, m):
    return ((x + m - 1) // m) * m


def mlp_kernel(x_ref, w1_ref, b1_ref, w2_ref, b2_ref, w3_ref, b3_ref, o_ref):
    # fc1 + ReLU: cast x to the MXU operand dtype in-kernel; accumulate in f32.
    x = x_ref[...].astype(w1_ref.dtype)
    h1 = jnp.dot(x, w1_ref[...], preferred_element_type=jnp.float32)
    h1 = jnp.maximum(h1 + b1_ref[...], 0.0)
    # fc2 + ReLU
    h2 = jnp.dot(h1.astype(w2_ref.dtype), w2_ref[...],
                 preferred_element_type=jnp.float32)
    h2 = jnp.maximum(h2 + b2_ref[...], 0.0)
    # fc3 (no activation)
    out = jnp.dot(h2.astype(w3_ref.dtype), w3_ref[...],
                  preferred_element_type=jnp.float32) + b3_ref[...]
    o_ref[...] = out.astype(o_ref.dtype)


def prepare_params(w1, b1, w2, b2, w3, b3, *, compute_dtype=jnp.bfloat16):
    """Pad + cast parameters ONCE (outside the per-call hot path).

    Hidden dim is padded to 128 lanes; matmul operands are cast to
    `compute_dtype` (bf16 by default for the bf16-native MXU); biases stay
    f32 for the f32 epilogue.  Input/output feature dims keep true widths.
    """
    state_size, hidden = w1.shape
    action_size = w3.shape[1]
    d_h = _round_up(hidden, LANE)

    def padw(w, rows, cols):
        return jnp.pad(w.astype(compute_dtype),
                       ((0, rows - w.shape[0]), (0, cols - w.shape[1])))

    def padb(b, cols):
        b = jnp.reshape(b, (1, -1)).astype(jnp.float32)
        return jnp.pad(b, ((0, 0), (0, cols - b.shape[1])))

    return (padw(w1, state_size, d_h), padb(b1, d_h),
            padw(w2, d_h, d_h), padb(b2, d_h),
            padw(w3, d_h, action_size), padb(b3, action_size))


def mlp_forward(x, w1p, b1p, w2p, b2p, w3p, b3p, *, block_batch=1024):
    """Pallas TPU forward pass.  Expects parameters from prepare_params()."""
    batch, state_size = x.shape
    d_h = w1p.shape[1]
    action_size = w3p.shape[1]

    # Batch tile: multiple of 16 rows, up to block_batch; keep >= 2 grid steps
    # when there's enough work so the "parallel" axis can span both v7x TCs.
    bpad = _round_up(batch, SUBLANE)
    tb = min(_round_up(block_batch, SUBLANE), bpad)
    if bpad >= 2 * SUBLANE:
        tb = min(tb, _round_up(pl.cdiv(bpad, 2), SUBLANE))
    bp = _round_up(batch, tb)
    if bp != batch:  # pad rows only (never lanes); extra rows sliced off below
        x = jnp.pad(x, ((0, bp - batch), (0, 0)))

    grid = (bp // tb,)
    resident = lambda i: (0, 0)   # same block every step -> stays in VMEM

    bytes_accessed = (int(x.size) * x.dtype.itemsize
                      + sum(int(a.size) * a.dtype.itemsize
                            for a in (w1p, b1p, w2p, b2p, w3p, b3p))
                      + bp * action_size * 4)
    cost = pl.CostEstimate(
        flops=2 * bp * (state_size * d_h + d_h * d_h + d_h * action_size),
        transcendentals=0,
        bytes_accessed=int(bytes_accessed),
    )

    out = pl.pallas_call(
        mlp_kernel,
        out_shape=jax.ShapeDtypeStruct((bp, action_size), jnp.float32),
        grid=grid,
        in_specs=[
            pl.BlockSpec((tb, state_size), lambda i: (i, 0)),   # x: streamed
            pl.BlockSpec((state_size, d_h), resident),          # w1
            pl.BlockSpec((1, d_h), resident),                   # b1
            pl.BlockSpec((d_h, d_h), resident),                 # w2
            pl.BlockSpec((1, d_h), resident),                   # b2
            pl.BlockSpec((d_h, action_size), resident),         # w3
            pl.BlockSpec((1, action_size), resident),           # b3
        ],
        out_specs=pl.BlockSpec((tb, action_size), lambda i: (i, 0)),
        compiler_params=pltpu.CompilerParams(
            dimension_semantics=("parallel",)),
        cost_estimate=cost,
    )(x, w1p, b1p, w2p, b2p, w3p, b3p)

    return out if bp == batch else out[:batch]


def mlp_reference(x, w1, b1, w2, b2, w3, b3):
    h1 = jnp.maximum(x @ w1 + b1, 0.0)
    h2 = jnp.maximum(h1 @ w2 + b2, 0.0)
    return h2 @ w3 + b3


def mlp_apply(x, raw_params, prepared_params, *, min_pallas_batch=64,
              block_batch=1024):
    """Dispatch: tiny batches are pure launch latency -> plain XLA dot chain."""
    if x.shape[0] < min_pallas_batch:
        return mlp_reference(x, *raw_params)
    return mlp_forward(x, *prepared_params, block_batch=block_batch)


def init_params(key, state_size, action_size, hidden=64):
    """Deterministic synthetic parameter init (PyTorch-Linear-like uniform)."""
    ks = jax.random.split(key, 6)

    def linear(kw, kb, fan_in, fan_out):
        bound = 1.0 / jnp.sqrt(fan_in)
        w = jax.random.uniform(kw, (fan_in, fan_out), jnp.float32, -bound, bound)
        b = jax.random.uniform(kb, (fan_out,), jnp.float32, -bound, bound)
        return w, b

    w1, b1 = linear(ks[0], ks[1], state_size, hidden)
    w2, b2 = linear(ks[2], ks[3], hidden, hidden)
    w3, b3 = linear(ks[4], ks[5], hidden, action_size)
    return w1, b1, w2, b2, w3, b3


if __name__ == "__main__":
    batch, state_size, action_size, hidden = 8, 8, 4, 64

    key = jax.random.PRNGKey(0)
    kx, kp = jax.random.split(key)
    x = jax.random.normal(kx, (batch, state_size), jnp.float32)
    raw = init_params(kp, state_size, action_size, hidden)
    ref = mlp_reference(x, *raw)

    # 1) Small batch through the Pallas kernel with f32 operands: exact check.
    prep_f32 = prepare_params(*raw, compute_dtype=jnp.float32)
    out = jax.block_until_ready(jax.jit(mlp_forward)(x, *prep_f32))
    assert out.shape == (batch, action_size)
    assert jnp.allclose(out, ref, atol=1e-5, rtol=1e-5)

    # 2) Dispatch helper: at batch=8 it takes the XLA fast path (exact).
    prep_bf16 = prepare_params(*raw)   # bf16 MXU operands (default)
    out_small = jax.block_until_ready(mlp_apply(x, raw, prep_bf16))
    assert jnp.allclose(out_small, ref, atol=1e-5, rtol=1e-5)

    # 3) Large batch: exercises the batch grid (resident weights, "parallel"
    #    axis with 2 steps) with bf16 operands + f32 accumulation.
    big_batch = 2048
    xb = jax.random.normal(jax.random.PRNGKey(1), (big_batch, state_size),
                           jnp.float32)
    outb = jax.block_until_ready(jax.jit(mlp_forward)(xb, *prep_bf16))
    refb = mlp_reference(xb, *raw)
    assert outb.shape == (big_batch, action_size)
    assert jnp.allclose(outb, refb, atol=5e-2, rtol=5e-2)

    print("KERNEL_OK")
</pallas_src>

<mosaic_0001>
module attributes {stable_mosaic.version = 11 : i64} {
  func.func @mlp_kernel(%arg0: i32, %arg1: memref<16x8xf32, #tpu.memory_space<vmem>>, %arg2: memref<8x128xf32, #tpu.memory_space<vmem>>, %arg3: memref<1x128xf32, #tpu.memory_space<vmem>>, %arg4: memref<128x128xf32, #tpu.memory_space<vmem>>, %arg5: memref<1x128xf32, #tpu.memory_space<vmem>>, %arg6: memref<128x4xf32, #tpu.memory_space<vmem>>, %arg7: memref<1x4xf32, #tpu.memory_space<vmem>>, %arg8: memref<16x4xf32, #tpu.memory_space<vmem>>) attributes {dimension_semantics = [#tpu.dimension_semantics<parallel>], iteration_bounds = array<i64: 1>, scalar_prefetch = 0 : i64, scratch_operands = 0 : i64, tpu.core_type = #tpu.core_type<tc>, window_params = [{transform_indices = @transform_0, window_bounds = array<i64: 16, 8>}, {pipeline_mode = #tpu.pipeline_mode<synchronous>, transform_indices = @transform_1, window_bounds = array<i64: 8, 128>}, {pipeline_mode = #tpu.pipeline_mode<synchronous>, transform_indices = @transform_2, window_bounds = array<i64: 1, 128>}, {pipeline_mode = #tpu.pipeline_mode<synchronous>, transform_indices = @transform_3, window_bounds = array<i64: 128, 128>}, {pipeline_mode = #tpu.pipeline_mode<synchronous>, transform_indices = @transform_4, window_bounds = array<i64: 1, 128>}, {pipeline_mode = #tpu.pipeline_mode<synchronous>, transform_indices = @transform_5, window_bounds = array<i64: 128, 4>}, {pipeline_mode = #tpu.pipeline_mode<synchronous>, transform_indices = @transform_6, window_bounds = array<i64: 1, 4>}, {transform_indices = @transform_7, window_bounds = array<i64: 16, 4>}]} {
    %c0 = arith.constant 0 : index
    %c0_0 = arith.constant 0 : index
    %0 = vector.load %arg1[%c0, %c0_0] : memref<16x8xf32, #tpu.memory_space<vmem>>, vector<16x8xf32>
    %c0_1 = arith.constant 0 : index
    %c0_2 = arith.constant 0 : index
    %1 = vector.load %arg2[%c0_1, %c0_2] : memref<8x128xf32, #tpu.memory_space<vmem>>, vector<8x128xf32>
    %cst = arith.constant dense<0.000000e+00> : vector<16x128xf32>
    %2 = tpu.matmul %0, %1, %cst {dimension_numbers = #tpu.dot_dimension_numbers<[1], [0], [0], [1], [0, 0, 1, 1], [], []>} : vector<16x8xf32>, vector<8x128xf32>, vector<16x128xf32> -> vector<16x128xf32>
    %c0_3 = arith.constant 0 : index
    %c0_4 = arith.constant 0 : index
    %3 = vector.load %arg3[%c0_3, %c0_4] : memref<1x128xf32, #tpu.memory_space<vmem>>, vector<1x128xf32>
    %4 = vector.broadcast %3 : vector<1x128xf32> to vector<16x128xf32>
    %5 = arith.addf %2, %4 : vector<16x128xf32>
    %cst_5 = arith.constant 0.000000e+00 : f32
    %6 = vector.broadcast %cst_5 : f32 to vector<16x128xf32>
    %7 = arith.maximumf %5, %6 : vector<16x128xf32>
    %c0_6 = arith.constant 0 : index
    %c0_7 = arith.constant 0 : index
    %8 = vector.load %arg4[%c0_6, %c0_7] : memref<128x128xf32, #tpu.memory_space<vmem>>, vector<128x128xf32>
    %cst_8 = arith.constant dense<0.000000e+00> : vector<16x128xf32>
    %9 = tpu.matmul %7, %8, %cst_8 {dimension_numbers = #tpu.dot_dimension_numbers<[1], [0], [0], [1], [0, 0, 1, 1], [], []>} : vector<16x128xf32>, vector<128x128xf32>, vector<16x128xf32> -> vector<16x128xf32>
    %c0_9 = arith.constant 0 : index
    %c0_10 = arith.constant 0 : index
    %10 = vector.load %arg5[%c0_9, %c0_10] : memref<1x128xf32, #tpu.memory_space<vmem>>, vector<1x128xf32>
    %11 = vector.broadcast %10 : vector<1x128xf32> to vector<16x128xf32>
    %12 = arith.addf %9, %11 : vector<16x128xf32>
    %cst_11 = arith.constant 0.000000e+00 : f32
    %13 = vector.broadcast %cst_11 : f32 to vector<16x128xf32>
    %14 = arith.maximumf %12, %13 : vector<16x128xf32>
    %c0_12 = arith.constant 0 : index
    %c0_13 = arith.constant 0 : index
    %15 = vector.load %arg6[%c0_12, %c0_13] : memref<128x4xf32, #tpu.memory_space<vmem>>, vector<128x4xf32>
    %cst_14 = arith.constant dense<0.000000e+00> : vector<16x4xf32>
    %16 = tpu.matmul %14, %15, %cst_14 {dimension_numbers = #tpu.dot_dimension_numbers<[1], [0], [0], [1], [0, 0, 1, 1], [], []>} : vector<16x128xf32>, vector<128x4xf32>, vector<16x4xf32> -> vector<16x4xf32>
    %c0_15 = arith.constant 0 : index
    %c0_16 = arith.constant 0 : index
    %17 = vector.load %arg7[%c0_15, %c0_16] : memref<1x4xf32, #tpu.memory_space<vmem>>, vector<1x4xf32>
    %18 = vector.broadcast %17 : vector<1x4xf32> to vector<16x4xf32>
    %19 = arith.addf %16, %18 : vector<16x4xf32>
    %c0_17 = arith.constant 0 : index
    %c0_18 = arith.constant 0 : index
    %20 = vector.load %arg8[%c0_17, %c0_18] : memref<16x4xf32, #tpu.memory_space<vmem>>, vector<16x4xf32>
    tpu.vector_store %arg8[%c0_17, %c0_18], %19 {strides = array<i32>} : memref<16x4xf32, #tpu.memory_space<vmem>>, vector<16x4xf32>,
    return
  }
  func.func @transform_0(%arg0: i32) -> (i32, i32) {
    %c0_i32 = arith.constant 0 : i32
    %c0_i32_0 = arith.constant 0 : i32
    return %arg0, %c0_i32 : i32, i32
  }
  func.func @transform_1(%arg0: i32) -> (i32, i32) {
    %c0_i32 = arith.constant 0 : i32
    %c0_i32_0 = arith.constant 0 : i32
    %c0_i32_1 = arith.constant 0 : i32
    return %c0_i32, %c0_i32_0 : i32, i32
  }
  func.func @transform_2(%arg0: i32) -> (i32, i32) {
    %c0_i32 = arith.constant 0 : i32
    %c0_i32_0 = arith.constant 0 : i32
    %c0_i32_1 = arith.constant 0 : i32
    return %c0_i32, %c0_i32_0 : i32, i32
  }
  func.func @transform_3(%arg0: i32) -> (i32, i32) {
    %c0_i32 = arith.constant 0 : i32
    %c0_i32_0 = arith.constant 0 : i32
    %c0_i32_1 = arith.constant 0 : i32
    return %c0_i32, %c0_i32_0 : i32, i32
  }
  func.func @transform_4(%arg0: i32) -> (i32, i32) {
    %c0_i32 = arith.constant 0 : i32
    %c0_i32_0 = arith.constant 0 : i32
    %c0_i32_1 = arith.constant 0 : i32
    return %c0_i32, %c0_i32_0 : i32, i32
  }
  func.func @transform_5(%arg0: i32) -> (i32, i32) {
    %c0_i32 = arith.constant 0 : i32
    %c0_i32_0 = arith.constant 0 : i32
    %c0_i32_1 = arith.constant 0 : i32
    return %c0_i32, %c0_i32_0 : i32, i32
  }
  func.func @transform_6(%arg0: i32) -> (i32, i32) {
    %c0_i32 = arith.constant 0 : i32
    %c0_i32_0 = arith.constant 0 : i32
    %c0_i32_1 = arith.constant 0 : i32
    return %c0_i32, %c0_i32_0 : i32, i32
  }
  func.func @transform_7(%arg0: i32) -> (i32, i32) {
    %c0_i32 = arith.constant 0 : i32
    %c0_i32_0 = arith.constant 0 : i32
    return %arg0, %c0_i32 : i32, i32
  }
}

</mosaic_0001>

<llo_original>
// kernel: mlp_forward.1
$region0: #{mlp_forward.1}
  #allocation0 [shape = 'u32[]', space=smem, size = 0x4, offset = 0x4, fixed_abs, tag = 'smem constant byte address 0x4 - core index']
  #allocation1 [shape = 'u32[144,128]{1,0:T(1,128)}', space=vmem, size = 0x12000, scoped, tag = 'internal scratch']
  %s0 = inlined_call_operand.vmem [shape: f32[16,8], index: 0, kind: input, shape index: {}]
  %s1 = inlined_call_operand.vmem [shape: f32[8,128], index: 1, kind: input, shape index: {}]
  %s2 = inlined_call_operand.vmem [shape: f32[1,128], index: 2, kind: input, shape index: {}]
  %s3 = inlined_call_operand.vmem [shape: f32[128,128], index: 3, kind: input, shape index: {}]
  %s4 = inlined_call_operand.vmem [shape: f32[1,128], index: 4, kind: input, shape index: {}]
  %s5 = inlined_call_operand.vmem [shape: f32[128,4], index: 5, kind: input, shape index: {}]
  %s6 = inlined_call_operand.vmem [shape: f32[1,4], index: 6, kind: input, shape index: {}]
  %s7 = inlined_call_operand.vmem [shape: f32[16,4], index: 7, kind: output, shape index: {}]
  %s8 = sld [smem:[#allocation0]]
  $region38: #{mlp_forward.1} parent=0
    _
  %s10 = ssub.s32 1, %s8
  %s11 = scalar_select 0, %s10, %s8
  // Predicated region
  $region2: #{mlp_forward.1} parent=0 // pred_check
    _
  $region3: #{mlp_forward.1} parent=0 // pred_check_branch
    %13 = sbr.rel (0) target = $region5
  $region4: #{mlp_forward.1} parent=0 // pred_region
    _
  $region5: #{mlp_forward.1} parent=0 // pred_fallthru
    _
  // Predicated region
  $region6: #{mlp_forward.1} parent=0 // pred_check
    _
  $region7: #{mlp_forward.1} parent=0 // pred_check_branch
    %15 = sbr.rel (0) target = $region9
  $region8: #{mlp_forward.1} parent=0 // pred_region
    _
  $region9: #{mlp_forward.1} parent=0 // pred_fallthru
    _
  // Predicated region
  $region10: #{mlp_forward.1} parent=0 // pred_check
    _
  $region11: #{mlp_forward.1} parent=0 // pred_check_branch
    %17 = sbr.rel (0) target = $region13
  $region12: #{mlp_forward.1} parent=0 // pred_region
    _
  $region13: #{mlp_forward.1} parent=0 // pred_fallthru
    _
  // Predicated region
  $region14: #{mlp_forward.1} parent=0 // pred_check
    _
  $region15: #{mlp_forward.1} parent=0 // pred_check_branch
    %19 = sbr.rel (0) target = $region17
  $region16: #{mlp_forward.1} parent=0 // pred_region
    _
  $region17: #{mlp_forward.1} parent=0 // pred_fallthru
    _
  // Predicated region
  $region18: #{mlp_forward.1} parent=0 // pred_check
    _
  $region19: #{mlp_forward.1} parent=0 // pred_check_branch
    %21 = sbr.rel (0) target = $region21
  $region20: #{mlp_forward.1} parent=0 // pred_region
    _
  $region21: #{mlp_forward.1} parent=0 // pred_fallthru
    _
  // Predicated region
  $region22: #{mlp_forward.1} parent=0 // pred_check
    _
  $region23: #{mlp_forward.1} parent=0 // pred_check_branch
    %23 = sbr.rel (0) target = $region25
  $region24: #{mlp_forward.1} parent=0 // pred_region
    _
  $region25: #{mlp_forward.1} parent=0 // pred_fallthru
    _
  // Predicated region
  $region26: #{mlp_forward.1} parent=0 // pred_check
    _
  $region27: #{mlp_forward.1} parent=0 // pred_check_branch
    %25 = sbr.rel (0) target = $region29
  $region28: #{mlp_forward.1} parent=0 // pred_region
    _
  $region29: #{mlp_forward.1} parent=0 // pred_fallthru
    _
  %v26 = vld [vmem:[%s0] sm:$0xff]
  %v27 = vld [vmem:[%s0 + $0x8] sm:$0xff]
  %v28 = vld [vmem:[%s1] sm:$0xff]
  %v29 = vld [vmem:[%s2] sm:$0x1]
  %v31 = vlaneseq
  %v32 = vshrl.u32 %v31, 7
  %v33 = vsub.s32 0, %v32
  %v34 = vrot.slane %v29, %v33
  %vm36 = vcmask 64512
  %v38 = vsel %vm36, %v26, 0
  %v41 = vsel %vm36, %v27, 0
  %43 = vmatprep.subr.mxu0 0.0
  %44 = vmatpush1.msra.mxu0 %v28
  %45 = vmatprep.subr.mxu0 0.0
  %46 = vmatpush1.msra.mxu0 0.0
  %47 = vmatprep.subr.mxu0 0.0
  %48 = vmatpush1.msra.mxu0 0.0
  %49 = vmatprep.subr.mxu0 0.0
  %50 = vmatpush1.msra.mxu0 0.0
  %51 = vmatprep.subr.mxu0 0.0
  %52 = vmatpush1.msra.mxu0 0.0
  %53 = vmatprep.subr.mxu0 0.0
  %54 = vmatpush1.msra.mxu0 0.0
  %55 = vmatprep.subr.mxu0 0.0
  %56 = vmatpush1.msra.mxu0 0.0
  %57 = vmatprep.subr.mxu0 0.0
  %58 = vmatpush1.msra.mxu0 0.0
  %59 = vmatprep.subr.mxu0 0.0
  %60 = vmatpush1.msra.mxu0 0.0
  %61 = vmatprep.subr.mxu0 0.0
  %62 = vmatpush1.msra.mxu0 0.0
  %63 = vmatprep.subr.mxu0 0.0
  %64 = vmatpush1.msra.mxu0 0.0
  %65 = vmatprep.subr.mxu0 0.0
  %66 = vmatpush1.msra.mxu0 0.0
  %67 = vmatprep.subr.mxu0 0.0
  %68 = vmatpush1.msra.mxu0 0.0
  %69 = vmatprep.subr.mxu0 0.0
  %70 = vmatpush1.msra.mxu0 0.0
  %71 = vmatprep.subr.mxu0 0.0
  %72 = vmatpush1.msra.mxu0 0.0
  %73 = vmatprep.subr.mxu0 0.0
  %74 = vmatpush1.msra.mxu0 0.0
  %75 = vmatprep.subr.mxu0 0.0
  %76 = vmatpush1.msra.mxu0 0.0
  %77 = vmatprep.subr.mxu0 0.0
  %78 = vmatpush1.msra.mxu0 0.0
  %79 = vmatprep.subr.mxu0 0.0
  %80 = vmatpush1.msra.mxu0 0.0
  %81 = vmatprep.subr.mxu0 0.0
  %82 = vmatpush1.msra.mxu0 0.0
  %83 = vmatprep.subr.mxu0 0.0
  %84 = vmatpush1.msra.mxu0 0.0
  %85 = vmatprep.subr.mxu0 0.0
  %86 = vmatpush1.msra.mxu0 0.0
  %87 = vmatprep.subr.mxu0 0.0
  %88 = vmatpush1.msra.mxu0 0.0
  %89 = vmatprep.subr.mxu0 0.0
  %90 = vmatpush1.msra.mxu0 0.0
  %91 = vmatprep.subr.mxu0 0.0
  %92 = vmatpush1.msra.mxu0 0.0
  %93 = vmatprep.subr.mxu0 0.0
  %94 = vmatpush1.msra.mxu0 0.0
  %95 = vmatprep.subr.mxu0 0.0
  %96 = vmatpush1.msra.mxu0 0.0
  %97 = vmatprep.subr.mxu0 0.0
  %98 = vmatpush1.msra.mxu0 0.0
  %99 = vmatprep.subr.mxu0 0.0
  %100 = vmatpush1.msra.mxu0 0.0
  %101 = vmatprep.subr.mxu0 0.0
  %102 = vmatpush1.msra.mxu0 0.0
  %103 = vmatprep.subr.mxu0 0.0
  %104 = vmatpush1.msra.mxu0 0.0
  %105 = vmatprep.subr.mxu0 0.0
  %106 = vmatpush1.msra.mxu0 0.0
  %107 = vmatprep.mubr.f32.mxu0 0.0
  %108 = vmatmul.mubr.f32.gmra.mrb[0].mxu0 %v38
  %v109 = vpop.f32.mrb[0].mxu0
  %v110 = vadd.f32 %v34, %v109
  %v111 = vpop.f32.mrb[0].mxu0
  %112 = vmatprep.mubr.f32.mxu0 0.0
  %113 = vmatmul.mubr.f32.gmra.mrb[0].mxu0 %v41
  %v114 = vpop.f32.mrb[0].mxu0
  %v115 = vadd.f32 %v34, %v114
  %v116 = vpop.f32.mrb[0].mxu0
  %117 = vdwg.mxu0
  %v118 = vmax.f32 %v110, 0.0
  %v119 = vmax.f32 %v115, 0.0
  %v120 = vld [vmem:[%s3] sm:$0xff]
  %v121 = vld [vmem:[%s3 + $0x8] sm:$0xff]
  %v122 = vld [vmem:[%s3 + $0x10] sm:$0xff]
  %v123 = vld [vmem:[%s3 + $0x18] sm:$0xff]
  %v124 = vld [vmem:[%s3 + $0x20] sm:$0xff]
  %v125 = vld [vmem:[%s3 + $0x28] sm:$0xff]
  %v126 = vld [vmem:[%s3 + $0x30] sm:$0xff]
  %v127 = vld [vmem:[%s3 + $0x38] sm:$0xff]
  %v128 = vld [vmem:[%s3 + $0x40] sm:$0xff]
  %v129 = vld [vmem:[%s3 + $0x48] sm:$0xff]
  %v130 = vld [vmem:[%s3 + $0x50] sm:$0xff]
  %v131 = vld [vmem:[%s3 + $0x58] sm:$0xff]
  %v132 = vld [vmem:[%s3 + $0x60] sm:$0xff]
  %v133 = vld [vmem:[%s3 + $0x68] sm:$0xff]
  %v134 = vld [vmem:[%s3 + $0x70] sm:$0xff]
  %v135 = vld [vmem:[%s3 + $0x78] sm:$0xff]
  %v136 = vld [vmem:[%s4] sm:$0x1]
  %v138 = vlaneseq
  %v139 = vshrl.u32 %v138, 7
  %v140 = vsub.s32 0, %v139
  %v141 = vrot.slane %v136, %v140
  %143 = vmatprep.subr.mxu0 0.0
  %144 = vmatpush1.msra.mxu0 %v120
  %145 = vmatprep.subr.mxu0 0.0
  %146 = vmatpush1.msra.mxu0 %v121
  %147 = vmatprep.subr.mxu0 0.0
  %148 = vmatpush1.msra.mxu0 %v122
  %149 = vmatprep.subr.mxu0 0.0
  %150 = vmatpush1.msra.mxu0 %v123
  %151 = vmatprep.subr.mxu0 0.0
  %152 = vmatpush1.msra.mxu0 %v124
  %153 = vmatprep.subr.mxu0 0.0
  %154 = vmatpush1.msra.mxu0 %v125
  %155 = vmatprep.subr.mxu0 0.0
  %156 = vmatpush1.msra.mxu0 %v126
  %157 = vmatprep.subr.mxu0 0.0
  %158 = vmatpush1.msra.mxu0 %v127
  %159 = vmatprep.subr.mxu0 0.0
  %160 = vmatpush1.msra.mxu0 %v128
  %161 = vmatprep.subr.mxu0 0.0
  %162 = vmatpush1.msra.mxu0 %v129
  %163 = vmatprep.subr.mxu0 0.0
  %164 = vmatpush1.msra.mxu0 %v130
  %165 = vmatprep.subr.mxu0 0.0
  %166 = vmatpush1.msra.mxu0 %v131
  %167 = vmatprep.subr.mxu0 0.0
  %168 = vmatpush1.msra.mxu0 %v132
  %169 = vmatprep.subr.mxu0 0.0
  %170 = vmatpush1.msra.mxu0 %v133
  %171 = vmatprep.subr.mxu0 0.0
  %172 = vmatpush1.msra.mxu0 %v134
  %173 = vmatprep.subr.mxu0 0.0
  %174 = vmatpush1.msra.mxu0 %v135
  %175 = vmatprep.subr.mxu0 0.0
  %176 = vmatpush1.msra.mxu0 0.0
  %177 = vmatprep.subr.mxu0 0.0
  %178 = vmatpush1.msra.mxu0 0.0
  %179 = vmatprep.subr.mxu0 0.0
  %180 = vmatpush1.msra.mxu0 0.0
  %181 = vmatprep.subr.mxu0 0.0
  %182 = vmatpush1.msra.mxu0 0.0
  %183 = vmatprep.subr.mxu0 0.0
  %184 = vmatpush1.msra.mxu0 0.0
  %185 = vmatprep.subr.mxu0 0.0
  %186 = vmatpush1.msra.mxu0 0.0
  %187 = vmatprep.subr.mxu0 0.0
  %188 = vmatpush1.msra.mxu0 0.0
  %189 = vmatprep.subr.mxu0 0.0
  %190 = vmatpush1.msra.mxu0 0.0
  %191 = vmatprep.subr.mxu0 0.0
  %192 = vmatpush1.msra.mxu0 0.0
  %193 = vmatprep.subr.mxu0 0.0
  %194 = vmatpush1.msra.mxu0 0.0
  %195 = vmatprep.subr.mxu0 0.0
  %196 = vmatpush1.msra.mxu0 0.0
  %197 = vmatprep.subr.mxu0 0.0
  %198 = vmatpush1.msra.mxu0 0.0
  %199 = vmatprep.subr.mxu0 0.0
  %200 = vmatpush1.msra.mxu0 0.0
  %201 = vmatprep.subr.mxu0 0.0
  %202 = vmatpush1.msra.mxu0 0.0
  %203 = vmatprep.subr.mxu0 0.0
  %204 = vmatpush1.msra.mxu0 0.0
  %205 = vmatprep.subr.mxu0 0.0
  %206 = vmatpush1.msra.mxu0 0.0
  %207 = vmatprep.mubr.f32.mxu0 0.0
  %208 = vmatmul.mubr.f32.gmra.mrb[0].mxu0 %v118
  %v209 = vpop.f32.mrb[0].mxu0
  %v210 = vadd.f32 %v141, %v209
  %v211 = vpop.f32.mrb[0].mxu0
  %212 = vmatprep.mubr.f32.mxu0 0.0
  %213 = vmatmul.mubr.f32.gmra.mrb[0].mxu0 %v119
  %v214 = vpop.f32.mrb[0].mxu0
  %v215 = vadd.f32 %v141, %v214
  %v216 = vpop.f32.mrb[0].mxu0
  %217 = vdwg.mxu0
  %v218 = vmax.f32 %v210, 0.0
  %v219 = vmax.f32 %v215, 0.0
  %v220 = vld [vmem:[%s5] sm:$0xff]
  %v221 = vld [vmem:[%s5 + $0x8] sm:$0xff]
  %v222 = vld [vmem:[%s5 + $0x10] sm:$0xff]
  %v223 = vld [vmem:[%s5 + $0x18] sm:$0xff]
  %v224 = vld [vmem:[%s5 + $0x20] sm:$0xff]
  %v225 = vld [vmem:[%s5 + $0x28] sm:$0xff]
  %v226 = vld [vmem:[%s5 + $0x30] sm:$0xff]
  %v227 = vld [vmem:[%s5 + $0x38] sm:$0xff]
  %v228 = vld [vmem:[%s5 + $0x40] sm:$0xff]
  %v229 = vld [vmem:[%s5 + $0x48] sm:$0xff]
  %v230 = vld [vmem:[%s5 + $0x50] sm:$0xff]
  %v231 = vld [vmem:[%s5 + $0x58] sm:$0xff]
  %v232 = vld [vmem:[%s5 + $0x60] sm:$0xff]
  %v233 = vld [vmem:[%s5 + $0x68] sm:$0xff]
  %v234 = vld [vmem:[%s5 + $0x70] sm:$0xff]
  %v235 = vld [vmem:[%s5 + $0x78] sm:$0xff]
  %v236 = vld [vmem:[%s6] sm:$0x1]
  %v238 = vlaneseq
  %v239 = vshrl.u32 %v238, 7
  %v240 = vsub.s32 0, %v239
  %v241 = vrot.slane %v236, %v240
  %243 = vmatprep.subr.mxu0 0.0
  %244 = vmatpush1.msra.mxu0 %v220
  %245 = vmatprep.subr.mxu0 0.0
  %246 = vmatpush1.msra.mxu0 %v221
  %247 = vmatprep.subr.mxu0 0.0
  %248 = vmatpush1.msra.mxu0 %v222
  %249 = vmatprep.subr.mxu0 0.0
  %250 = vmatpush1.msra.mxu0 %v223
  %251 = vmatprep.subr.mxu0 0.0
  %252 = vmatpush1.msra.mxu0 %v224
  %253 = vmatprep.subr.mxu0 0.0
  %254 = vmatpush1.msra.mxu0 %v225
  %255 = vmatprep.subr.mxu0 0.0
  %256 = vmatpush1.msra.mxu0 %v226
  %257 = vmatprep.subr.mxu0 0.0
  %258 = vmatpush1.msra.mxu0 %v227
  %259 = vmatprep.subr.mxu0 0.0
  %260 = vmatpush1.msra.mxu0 %v228
  %261 = vmatprep.subr.mxu0 0.0
  %262 = vmatpush1.msra.mxu0 %v229
  %263 = vmatprep.subr.mxu0 0.0
  %264 = vmatpush1.msra.mxu0 %v230
  %265 = vmatprep.subr.mxu0 0.0
  %266 = vmatpush1.msra.mxu0 %v231
  %267 = vmatprep.subr.mxu0 0.0
  %268 = vmatpush1.msra.mxu0 %v232
  %269 = vmatprep.subr.mxu0 0.0
  %270 = vmatpush1.msra.mxu0 %v233
  %271 = vmatprep.subr.mxu0 0.0
  %272 = vmatpush1.msra.mxu0 %v234
  %273 = vmatprep.subr.mxu0 0.0
  %274 = vmatpush1.msra.mxu0 %v235
  %275 = vmatprep.subr.mxu0 0.0
  %276 = vmatpush1.msra.mxu0 0.0
  %277 = vmatprep.subr.mxu0 0.0
  %278 = vmatpush1.msra.mxu0 0.0
  %279 = vmatprep.subr.mxu0 0.0
  %280 = vmatpush1.msra.mxu0 0.0
  %281 = vmatprep.subr.mxu0 0.0
  %282 = vmatpush1.msra.mxu0 0.0
  %283 = vmatprep.subr.mxu0 0.0
  %284 = vmatpush1.msra.mxu0 0.0
  %285 = vmatprep.subr.mxu0 0.0
  %286 = vmatpush1.msra.mxu0 0.0
  %287 = vmatprep.subr.mxu0 0.0
  %288 = vmatpush1.msra.mxu0 0.0
  %289 = vmatprep.subr.mxu0 0.0
  %290 = vmatpush1.msra.mxu0 0.0
  %291 = vmatprep.subr.mxu0 0.0
  %292 = vmatpush1.msra.mxu0 0.0
  %293 = vmatprep.subr.mxu0 0.0
  %294 = vmatpush1.msra.mxu0 0.0
  %295 = vmatprep.subr.mxu0 0.0
  %296 = vmatpush1.msra.mxu0 0.0
  %297 = vmatprep.subr.mxu0 0.0
  %298 = vmatpush1.msra.mxu0 0.0
  %299 = vmatprep.subr.mxu0 0.0
  %300 = vmatpush1.msra.mxu0 0.0
  %301 = vmatprep.subr.mxu0 0.0
  %302 = vmatpush1.msra.mxu0 0.0
  %303 = vmatprep.subr.mxu0 0.0
  %304 = vmatpush1.msra.mxu0 0.0
  %305 = vmatprep.subr.mxu0 0.0
  %306 = vmatpush1.msra.mxu0 0.0
  %307 = vmatprep.mubr.f32.mxu0 0.0
  %308 = vmatmul.mubr.f32.gmra.mrb[0].mxu0 %v218
  %v309 = vpop.f32.mrb[0].mxu0
  %v310 = vadd.f32 %v241, %v309
  %v311 = vpop.f32.mrb[0].mxu0
  %312 = vmatprep.mubr.f32.mxu0 0.0
  %313 = vmatmul.mubr.f32.gmra.mrb[0].mxu0 %v219
  %v314 = vpop.f32.mrb[0].mxu0
  %v315 = vadd.f32 %v241, %v314
  %v316 = vpop.f32.mrb[0].mxu0
  %317 = vdwg.mxu0
  %vm318 = vcmask 31744
  %319 = vst.msk [vmem:[%s7] sm:$0xff] %vm318, %v310
  %320 = vst.msk [vmem:[%s7 + $0x8] sm:$0xff] %vm318, %v315
  // Predicated region
  $region30: #{mlp_forward.1} parent=0 // pred_check
    _
  $region31: #{mlp_forward.1} parent=0 // pred_check_branch
    %322 = sbr.rel (0) target = $region33
  $region32: #{mlp_forward.1} parent=0 // pred_region
    _
  $region33: #{mlp_forward.1} parent=0 // pred_fallthru
    _
  // Predicated region
  $region34: #{mlp_forward.1} parent=0 // pred_check
    _
  $region35: #{mlp_forward.1} parent=0 // pred_check_branch
    %324 = sbr.rel (0) target = $region37
  $region36: #{mlp_forward.1} parent=0 // pred_region
    _
  $region37: #{mlp_forward.1} parent=0 // pred_fallthru
    _

</llo_original>
